<compile_context>
chip_gen: v6e
topology: v6e:2x2x1
jax: 0.10.0
libtpu: 0.0.40
codegen_flags: <defaults>
</compile_context>

<pallas_src>
import functools

import jax
import jax.numpy as jnp
from jax.experimental import pallas as pl
from jax.experimental.pallas import tpu as pltpu

VMEM = pltpu.MemorySpace.VMEM
LANE = 128


def _round_up(v, m):
    return (v + m - 1) // m * m


def _vmem_specs(n):
    return [pl.BlockSpec(memory_space=VMEM) for _ in range(n)]


def _pad_rows(n):
    """Pick node-dim padding + row tile for the streaming A@XW kernel."""
    if n >= 512:
        tm = 512
        n_pad = _round_up(n, tm)
    else:
        n_pad = _round_up(n, 16)   # bf16 sublane packing needs multiples of 16
        tm = n_pad
    return n_pad, tm


# ---------------------------- Pallas kernels ----------------------------

def _xw_kernel(x_ref, w_ref, o_ref):
    # Small dense matmul XW = X @ W, computed once per layer and kept for the
    # row-streaming kernel (avoids recomputing it for every row tile).
    o_ref[...] = jnp.dot(
        x_ref[...], w_ref[...], preferred_element_type=jnp.float32
    ).astype(o_ref.dtype)


def xw_matmul(x, w):
    n, _ = x.shape
    c = w.shape[1]
    return pl.pallas_call(
        _xw_kernel,
        out_shape=jax.ShapeDtypeStruct((n, c), jnp.bfloat16),
        in_specs=_vmem_specs(2),
        out_specs=pl.BlockSpec(memory_space=VMEM),
    )(x, w)


def _spmm_bias_relu_kernel(a_ref, xw_ref, b_ref, o_ref):
    # relu(A_hat_tile @ XW + b)   -- bf16 operands, f32 MXU accumulation.
    acc = jnp.dot(a_ref[...], xw_ref[...], preferred_element_type=jnp.float32)
    o_ref[...] = jnp.maximum(acc + b_ref[...], 0.0)


def spmm_bias_relu(a_bf16, xw_bf16, b, tm):
    n_pad = a_bf16.shape[0]
    c = xw_bf16.shape[1]
    grid = (n_pad // tm,)
    cost = pl.CostEstimate(
        flops=2 * n_pad * n_pad * c,
        transcendentals=0,
        bytes_accessed=2 * n_pad * n_pad + 2 * n_pad * c + 4 * n_pad * c + 4 * c,
    )
    return pl.pallas_call(
        _spmm_bias_relu_kernel,
        out_shape=jax.ShapeDtypeStruct((n_pad, c), jnp.float32),
        grid_spec=pltpu.PrefetchScalarGridSpec(
            num_scalar_prefetch=0,
            grid=grid,
            in_specs=[
                pl.BlockSpec((tm, n_pad), lambda i: (i, 0)),   # stream A rows
                pl.BlockSpec((n_pad, c), lambda i: (0, 0)),    # XW resident
                pl.BlockSpec((1, c), lambda i: (0, 0)),        # bias resident
            ],
            out_specs=pl.BlockSpec((tm, c), lambda i: (i, 0)),
        ),
        compiler_params=pltpu.CompilerParams(
            dimension_semantics=("parallel",)),
        cost_estimate=cost,
    )(a_bf16, xw_bf16, b)


def _readout_mlp_kernel(num_classes, x_ref, m_ref, invc_ref,
                        w1t_ref, w1b_ref, b1_ref, w2_ref, b2_ref, o_ref):
    # Fused: cat([gmp, gap]) -> Linear -> ReLU -> Linear -> log_softmax.
    # (dropout 0.3 is identity in eval mode.)
    x = x_ref[...]                                    # [n, C], x >= 0 (post ReLU)
    m = m_ref[...]                                    # [G, n] one-hot membership
    # gap: mean pool via matmul; gmp: max pool via masked-by-multiplication max
    # (safe because x >= 0; empty graphs yield 0, never -inf).
    mean = jnp.dot(m, x, preferred_element_type=jnp.float32) * invc_ref[...]
    mx = jnp.max(m[:, :, None] * x[None, :, :], axis=1)
    # concat([gmp, gap]) @ W1 == gmp @ W1_top + gap @ W1_bot  (no lane concat).
    h = (jnp.dot(mx, w1t_ref[...], preferred_element_type=jnp.float32)
         + jnp.dot(mean, w1b_ref[...], preferred_element_type=jnp.float32)
         + b1_ref[...])
    h = jnp.maximum(h, 0.0)
    logits = jnp.dot(h, w2_ref[...], preferred_element_type=jnp.float32) + b2_ref[...]
    # Mask padded class lanes so the padded softmax matches the unpadded one.
    col = jax.lax.broadcasted_iota(jnp.int32, logits.shape, 1)
    logits = jnp.where(col < num_classes, logits, -1e30)
    lmax = jnp.max(logits, axis=-1, keepdims=True)
    s = logits - lmax
    lse = jnp.log(jnp.sum(jnp.exp(s), axis=-1, keepdims=True))
    o_ref[...] = s - lse


def readout_mlp(x, member, inv_counts, w1t, w1b, b1, w2, b2, num_classes):
    g = member.shape[0]
    cls_pad = w2.shape[1]
    kern = functools.partial(_readout_mlp_kernel, num_classes)
    return pl.pallas_call(
        kern,
        out_shape=jax.ShapeDtypeStruct((g, cls_pad), jnp.float32),
        in_specs=_vmem_specs(8),
        out_specs=pl.BlockSpec(memory_space=VMEM),
    )(x, member, inv_counts, w1t, w1b, b1, w2, b2)


# ------------------------------ JAX glue -------------------------------

def edge_index_to_dense(edge_index, n):
    src, dst = edge_index[0], edge_index[1]
    a = jnp.zeros((n, n), jnp.float32).at[src, dst].set(1.0)
    return jnp.maximum(a, a.T)  # undirected


def gcn_norm(adj):
    n = adj.shape[0]
    a = adj + jnp.eye(n, dtype=adj.dtype)
    deg = jnp.sum(a, axis=1)
    dinv = jnp.where(deg > 0, 1.0 / jnp.sqrt(deg), 0.0)
    return dinv[:, None] * a * dinv[None, :]


def gcn_conv_relu(a_hat, x, w, b):
    """relu(A_hat @ X @ W + b) with row-tiled bf16 streaming of A_hat."""
    n = a_hat.shape[0]
    n_pad, tm = _pad_rows(n)
    pad_n = n_pad - n
    a_p = jnp.pad(a_hat.astype(jnp.bfloat16), ((0, pad_n), (0, pad_n)))
    x_p = jnp.pad(x, ((0, pad_n), (0, 0)))
    xw = xw_matmul(x_p, w)                 # [n_pad, C_pad] bf16, computed once
    out = spmm_bias_relu(a_p, xw, b, tm)   # [n_pad, C_pad] f32
    return out[:n]


def skip_pool(x, adj_raw, batch, stride=2):
    # TODO(synk): SKipPool_Full / SkipPool_padded source (learned scorer,
    # epoch-dependent ratio, multi-process striding) is not available;
    # deterministic fixStride variant: keep every `stride`-th node and restrict
    # the graph to them (strided slices, no gather materialization).
    return x[::stride], adj_raw[::stride, ::stride], batch[::stride]


def init_params(key, num_features, nhid, num_classes):
    """Random params, zero-padded so every channel dim is a multiple of 128."""
    ks = jax.random.split(key, 8)
    f_pad = _round_up(max(num_features, 1), LANE)
    c1, c2, c3 = _round_up(nhid, LANE), _round_up(2 * nhid, LANE), _round_up(4 * nhid, LANE)
    hm = _round_up(nhid, LANE)
    cls_pad = _round_up(num_classes, LANE)

    def lin(k, fi, fo, fi_pad, fo_pad):
        w = 0.1 * jax.random.normal(k, (fi, fo), jnp.float32)
        return jnp.zeros((fi_pad, fo_pad), jnp.float32).at[:fi, :fo].set(w)

    return {
        "w1": lin(ks[0], num_features, nhid, f_pad, c1),
        "b1": jnp.zeros((1, c1), jnp.float32),
        "w2": lin(ks[1], nhid, 2 * nhid, c1, c2),
        "b2": jnp.zeros((1, c2), jnp.float32),
        "w3": lin(ks[2], 2 * nhid, 4 * nhid, c2, c3),
        "b3": jnp.zeros((1, c3), jnp.float32),
        # MLP([8*nhid, nhid, num_classes]); first weight split into the gmp /
        # gap halves so the kernel never concatenates along the lane axis.
        "mw1_top": lin(ks[3], 4 * nhid, nhid, c3, hm),
        "mw1_bot": lin(ks[4], 4 * nhid, nhid, c3, hm),
        "mb1": jnp.zeros((1, hm), jnp.float32),
        "mw2": lin(ks[5], nhid, num_classes, hm, cls_pad),
        "mb2": jnp.zeros((1, cls_pad), jnp.float32),
    }


def net_forward(params, x, edge_index, batch, num_graphs, num_classes):
    n = x.shape[0]
    f_pad = params["w1"].shape[0]
    x = jnp.zeros((n, f_pad), jnp.float32).at[:, : x.shape[1]].set(x)
    adj = edge_index_to_dense(edge_index, n)

    # conv1 + relu, pool1
    x = gcn_conv_relu(gcn_norm(adj), x, params["w1"], params["b1"])
    x, adj, batch = skip_pool(x, adj, batch, stride=2)
    # conv2 + relu, pool2
    x = gcn_conv_relu(gcn_norm(adj), x, params["w2"], params["b2"])
    x, adj, batch = skip_pool(x, adj, batch, stride=2)
    # conv3 + relu
    x = gcn_conv_relu(gcn_norm(adj), x, params["w3"], params["b3"])

    # fused readout (gmp || gap) + MLP head + log_softmax
    member = (batch[None, :] == jnp.arange(num_graphs)[:, None]).astype(jnp.float32)
    inv_counts = 1.0 / jnp.maximum(jnp.sum(member, axis=1, keepdims=True), 1.0)
    out = readout_mlp(x, member, inv_counts,
                      params["mw1_top"], params["mw1_bot"], params["mb1"],
                      params["mw2"], params["mb2"], num_classes)
    return out[:, :num_classes]


forward = jax.jit(net_forward, static_argnums=(4, 5))


if __name__ == "__main__":
    # Small synthetic config: num_features=4, nhid=8, num_classes=3,
    # 2 graphs x 8 nodes (ring graphs), pooling_ratio ~ 0.5 -> fixStride 2.
    num_features, nhid, num_classes = 4, 8, 3
    nodes_per_graph, num_graphs = 8, 2
    n = nodes_per_graph * num_graphs

    key = jax.random.PRNGKey(0)
    k_x, k_p = jax.random.split(key)

    x = jax.random.normal(k_x, (n, num_features), jnp.float32)

    # ring edges inside each graph (undirected handled in edge_index_to_dense)
    src, dst = [], []
    for g in range(num_graphs):
        off = g * nodes_per_graph
        for i in range(nodes_per_graph):
            src.append(off + i)
            dst.append(off + (i + 1) % nodes_per_graph)
    edge_index = jnp.array([src, dst], dtype=jnp.int32)
    batch = jnp.repeat(jnp.arange(num_graphs, dtype=jnp.int32), nodes_per_graph)

    params = init_params(k_p, num_features, nhid, num_classes)

    out = forward(params, x, edge_index, batch, num_graphs, num_classes)
    out = jax.block_until_ready(out)

    assert out.shape == (num_graphs, num_classes)
    # rows of log_softmax must sum (in prob space) to ~1
    assert jnp.allclose(jnp.sum(jnp.exp(out), axis=-1), 1.0, atol=1e-5)
    assert bool(jnp.all(jnp.isfinite(out)))
    print("KERNEL_OK")
</pallas_src>

<mosaic_0001>
module attributes {stable_mosaic.version = 11 : i64} {
  func.func @_xw_kernel(%arg0: memref<16x128xf32, #tpu.memory_space<vmem>>, %arg1: memref<128x128xf32, #tpu.memory_space<vmem>>, %arg2: memref<16x128xbf16, #tpu.memory_space<vmem>>) attributes {dimension_semantics = [], scalar_prefetch = 0 : i64, scratch_operands = 0 : i64, tpu.core_type = #tpu.core_type<tc>} {
    %c0 = arith.constant 0 : index
    %c0_0 = arith.constant 0 : index
    %0 = vector.load %arg0[%c0, %c0_0] : memref<16x128xf32, #tpu.memory_space<vmem>>, vector<16x128xf32>
    %c0_1 = arith.constant 0 : index
    %c0_2 = arith.constant 0 : index
    %1 = vector.load %arg1[%c0_1, %c0_2] : memref<128x128xf32, #tpu.memory_space<vmem>>, vector<128x128xf32>
    %cst = arith.constant dense<0.000000e+00> : vector<16x128xf32>
    %2 = tpu.matmul %0, %1, %cst {dimension_numbers = #tpu.dot_dimension_numbers<[1], [0], [0], [1], [0, 0, 1, 1], [], []>} : vector<16x128xf32>, vector<128x128xf32>, vector<16x128xf32> -> vector<16x128xf32>
    %3 = arith.truncf %2 : vector<16x128xf32> to vector<16x128xbf16>
    %c0_3 = arith.constant 0 : index
    %c0_4 = arith.constant 0 : index
    %4 = vector.load %arg2[%c0_3, %c0_4] : memref<16x128xbf16, #tpu.memory_space<vmem>>, vector<16x128xbf16>
    tpu.vector_store %arg2[%c0_3, %c0_4], %3 {strides = array<i32>} : memref<16x128xbf16, #tpu.memory_space<vmem>>, vector<16x128xbf16>,
    return
  }
}

module attributes {stable_mosaic.version = 11 : i64} {
  func.func @_spmm_bias_relu_kernel(%arg0: i32, %arg1: memref<16x16xbf16, #tpu.memory_space<vmem>>, %arg2: memref<16x128xbf16, #tpu.memory_space<vmem>>, %arg3: memref<1x128xf32, #tpu.memory_space<vmem>>, %arg4: memref<16x128xf32, #tpu.memory_space<vmem>>) attributes {dimension_semantics = [#tpu.dimension_semantics<parallel>], iteration_bounds = array<i64: 1>, scalar_prefetch = 0 : i64, scratch_operands = 0 : i64, tpu.core_type = #tpu.core_type<tc>, window_params = [{transform_indices = @transform_0, window_bounds = array<i64: 16, 16>}, {pipeline_mode = #tpu.pipeline_mode<synchronous>, transform_indices = @transform_1, window_bounds = array<i64: 16, 128>}, {pipeline_mode = #tpu.pipeline_mode<synchronous>, transform_indices = @transform_2, window_bounds = array<i64: 1, 128>}, {transform_indices = @transform_3, window_bounds = array<i64: 16, 128>}]} {
    %c0 = arith.constant 0 : index
    %c0_0 = arith.constant 0 : index
    %0 = vector.load %arg1[%c0, %c0_0] : memref<16x16xbf16, #tpu.memory_space<vmem>>, vector<16x16xbf16>
    %c0_1 = arith.constant 0 : index
    %c0_2 = arith.constant 0 : index
    %1 = vector.load %arg2[%c0_1, %c0_2] : memref<16x128xbf16, #tpu.memory_space<vmem>>, vector<16x128xbf16>
    %cst = arith.constant dense<0.000000e+00> : vector<16x128xf32>
    %2 = tpu.matmul %0, %1, %cst {dimension_numbers = #tpu.dot_dimension_numbers<[1], [0], [0], [1], [0, 0, 1, 1], [], []>} : vector<16x16xbf16>, vector<16x128xbf16>, vector<16x128xf32> -> vector<16x128xf32>
    %c0_3 = arith.constant 0 : index
    %c0_4 = arith.constant 0 : index
    %3 = vector.load %arg3[%c0_3, %c0_4] : memref<1x128xf32, #tpu.memory_space<vmem>>, vector<1x128xf32>
    %4 = vector.broadcast %3 : vector<1x128xf32> to vector<16x128xf32>
    %5 = arith.addf %2, %4 : vector<16x128xf32>
    %cst_5 = arith.constant 0.000000e+00 : f32
    %6 = vector.broadcast %cst_5 : f32 to vector<16x128xf32>
    %7 = arith.maximumf %5, %6 : vector<16x128xf32>
    %c0_6 = arith.constant 0 : index
    %c0_7 = arith.constant 0 : index
    %8 = vector.load %arg4[%c0_6, %c0_7] : memref<16x128xf32, #tpu.memory_space<vmem>>, vector<16x128xf32>
    tpu.vector_store %arg4[%c0_6, %c0_7], %7 {strides = array<i32>} : memref<16x128xf32, #tpu.memory_space<vmem>>, vector<16x128xf32>,
    return
  }
  func.func @transform_0(%arg0: i32) -> (i32, i32) {
    %c0_i32 = arith.constant 0 : i32
    %c0_i32_0 = arith.constant 0 : i32
    return %arg0, %c0_i32 : i32, i32
  }
  func.func @transform_1(%arg0: i32) -> (i32, i32) {
    %c0_i32 = arith.constant 0 : i32
    %c0_i32_0 = arith.constant 0 : i32
    %c0_i32_1 = arith.constant 0 : i32
    return %c0_i32, %c0_i32_0 : i32, i32
  }
  func.func @transform_2(%arg0: i32) -> (i32, i32) {
    %c0_i32 = arith.constant 0 : i32
    %c0_i32_0 = arith.constant 0 : i32
    %c0_i32_1 = arith.constant 0 : i32
    return %c0_i32, %c0_i32_0 : i32, i32
  }
  func.func @transform_3(%arg0: i32) -> (i32, i32) {
    %c0_i32 = arith.constant 0 : i32
    %c0_i32_0 = arith.constant 0 : i32
    return %arg0, %c0_i32 : i32, i32
  }
}

module attributes {stable_mosaic.version = 11 : i64} {
  func.func @_xw_kernel(%arg0: memref<16x128xf32, #tpu.memory_space<vmem>>, %arg1: memref<128x128xf32, #tpu.memory_space<vmem>>, %arg2: memref<16x128xbf16, #tpu.memory_space<vmem>>) attributes {dimension_semantics = [], scalar_prefetch = 0 : i64, scratch_operands = 0 : i64, tpu.core_type = #tpu.core_type<tc>} {
    %c0 = arith.constant 0 : index
    %c0_0 = arith.constant 0 : index
    %0 = vector.load %arg0[%c0, %c0_0] : memref<16x128xf32, #tpu.memory_space<vmem>>, vector<16x128xf32>
    %c0_1 = arith.constant 0 : index
    %c0_2 = arith.constant 0 : index
    %1 = vector.load %arg1[%c0_1, %c0_2] : memref<128x128xf32, #tpu.memory_space<vmem>>, vector<128x128xf32>
    %cst = arith.constant dense<0.000000e+00> : vector<16x128xf32>
    %2 = tpu.matmul %0, %1, %cst {dimension_numbers = #tpu.dot_dimension_numbers<[1], [0], [0], [1], [0, 0, 1, 1], [], []>} : vector<16x128xf32>, vector<128x128xf32>, vector<16x128xf32> -> vector<16x128xf32>
    %3 = arith.truncf %2 : vector<16x128xf32> to vector<16x128xbf16>
    %c0_3 = arith.constant 0 : index
    %c0_4 = arith.constant 0 : index
    %4 = vector.load %arg2[%c0_3, %c0_4] : memref<16x128xbf16, #tpu.memory_space<vmem>>, vector<16x128xbf16>
    tpu.vector_store %arg2[%c0_3, %c0_4], %3 {strides = array<i32>} : memref<16x128xbf16, #tpu.memory_space<vmem>>, vector<16x128xbf16>,
    return
  }
}

module attributes {stable_mosaic.version = 11 : i64} {
  func.func @_readout_mlp_kernel(%arg0: memref<4x128xf32, #tpu.memory_space<vmem>>, %arg1: memref<2x4xf32, #tpu.memory_space<vmem>>, %arg2: memref<2x1xf32, #tpu.memory_space<vmem>>, %arg3: memref<128x128xf32, #tpu.memory_space<vmem>>, %arg4: memref<128x128xf32, #tpu.memory_space<vmem>>, %arg5: memref<1x128xf32, #tpu.memory_space<vmem>>, %arg6: memref<128x128xf32, #tpu.memory_space<vmem>>, %arg7: memref<1x128xf32, #tpu.memory_space<vmem>>, %arg8: memref<2x128xf32, #tpu.memory_space<vmem>>) attributes {dimension_semantics = [], scalar_prefetch = 0 : i64, scratch_operands = 0 : i64, tpu.core_type = #tpu.core_type<tc>} {
    %c0 = arith.constant 0 : index
    %c0_0 = arith.constant 0 : index
    %0 = vector.load %arg0[%c0, %c0_0] : memref<4x128xf32, #tpu.memory_space<vmem>>, vector<4x128xf32>
    %c0_1 = arith.constant 0 : index
    %c0_2 = arith.constant 0 : index
    %1 = vector.load %arg1[%c0_1, %c0_2] : memref<2x4xf32, #tpu.memory_space<vmem>>, vector<2x4xf32>
    %cst = arith.constant dense<0.000000e+00> : vector<2x128xf32>
    %2 = tpu.matmul %1, %0, %cst {dimension_numbers = #tpu.dot_dimension_numbers<[1], [0], [0], [1], [0, 0, 1, 1], [], []>} : vector<2x4xf32>, vector<4x128xf32>, vector<2x128xf32> -> vector<2x128xf32>
    %c0_3 = arith.constant 0 : index
    %c0_4 = arith.constant 0 : index
    %3 = vector.load %arg2[%c0_3, %c0_4] : memref<2x1xf32, #tpu.memory_space<vmem>>, vector<2x1xf32>
    %4 = vector.broadcast %3 : vector<2x1xf32> to vector<2x128xf32>
    %5 = arith.mulf %2, %4 : vector<2x128xf32>
    %6 = vector.shape_cast %1 : vector<2x4xf32> to vector<2x4x1xf32>
    %7 = vector.shape_cast %0 : vector<4x128xf32> to vector<1x4x128xf32>
    %8 = vector.broadcast %6 : vector<2x4x1xf32> to vector<2x4x128xf32>
    %9 = vector.broadcast %7 : vector<1x4x128xf32> to vector<2x4x128xf32>
    %10 = arith.mulf %8, %9 : vector<2x4x128xf32>
    %cst_5 = arith.constant dense<0xFF800000> : vector<2x128xf32>
    %11 = vector.multi_reduction <maximumf>, %10, %cst_5 [1] : vector<2x4x128xf32> to vector<2x128xf32>
    %c0_6 = arith.constant 0 : index
    %c0_7 = arith.constant 0 : index
    %12 = vector.load %arg3[%c0_6, %c0_7] : memref<128x128xf32, #tpu.memory_space<vmem>>, vector<128x128xf32>
    %cst_8 = arith.constant dense<0.000000e+00> : vector<2x128xf32>
    %13 = tpu.matmul %11, %12, %cst_8 {dimension_numbers = #tpu.dot_dimension_numbers<[1], [0], [0], [1], [0, 0, 1, 1], [], []>} : vector<2x128xf32>, vector<128x128xf32>, vector<2x128xf32> -> vector<2x128xf32>
    %c0_9 = arith.constant 0 : index
    %c0_10 = arith.constant 0 : index
    %14 = vector.load %arg4[%c0_9, %c0_10] : memref<128x128xf32, #tpu.memory_space<vmem>>, vector<128x128xf32>
    %cst_11 = arith.constant dense<0.000000e+00> : vector<2x128xf32>
    %15 = tpu.matmul %5, %14, %cst_11 {dimension_numbers = #tpu.dot_dimension_numbers<[1], [0], [0], [1], [0, 0, 1, 1], [], []>} : vector<2x128xf32>, vector<128x128xf32>, vector<2x128xf32> -> vector<2x128xf32>
    %16 = arith.addf %13, %15 : vector<2x128xf32>
    %c0_12 = arith.constant 0 : index
    %c0_13 = arith.constant 0 : index
    %17 = vector.load %arg5[%c0_12, %c0_13] : memref<1x128xf32, #tpu.memory_space<vmem>>, vector<1x128xf32>
    %18 = vector.broadcast %17 : vector<1x128xf32> to vector<2x128xf32>
    %19 = arith.addf %16, %18 : vector<2x128xf32>
    %cst_14 = arith.constant 0.000000e+00 : f32
    %20 = vector.broadcast %cst_14 : f32 to vector<2x128xf32>
    %21 = arith.maximumf %19, %20 : vector<2x128xf32>
    %c0_15 = arith.constant 0 : index
    %c0_16 = arith.constant 0 : index
    %22 = vector.load %arg6[%c0_15, %c0_16] : memref<128x128xf32, #tpu.memory_space<vmem>>, vector<128x128xf32>
    %cst_17 = arith.constant dense<0.000000e+00> : vector<2x128xf32>
    %23 = tpu.matmul %21, %22, %cst_17 {dimension_numbers = #tpu.dot_dimension_numbers<[1], [0], [0], [1], [0, 0, 1, 1], [], []>} : vector<2x128xf32>, vector<128x128xf32>, vector<2x128xf32> -> vector<2x128xf32>
    %c0_18 = arith.constant 0 : index
    %c0_19 = arith.constant 0 : index
    %24 = vector.load %arg7[%c0_18, %c0_19] : memref<1x128xf32, #tpu.memory_space<vmem>>, vector<1x128xf32>
    %25 = vector.broadcast %24 : vector<1x128xf32> to vector<2x128xf32>
    %26 = arith.addf %23, %25 : vector<2x128xf32>
    %27 = tpu.iota {dimensions = array<i32: 1>} : vector<2x128xi32>
    %c3_i32 = arith.constant 3 : i32
    %28 = vector.broadcast %c3_i32 : i32 to vector<2x128xi32>
    %29 = arith.cmpi slt, %27, %28 : vector<2x128xi32>
    %cst_20 = arith.constant -1.000000e+30 : f32
    %30 = vector.broadcast %cst_20 : f32 to vector<2x128xf32>
    %31 = arith.select %29, %26, %30 : vector<2x128xi1>, vector<2x128xf32>
    %cst_21 = arith.constant dense<0xFF800000> : vector<2xf32>
    %32 = vector.multi_reduction <maximumf>, %31, %cst_21 [1] : vector<2x128xf32> to vector<2xf32>
    %33 = vector.shape_cast %32 : vector<2xf32> to vector<2x1xf32>
    %34 = vector.broadcast %33 : vector<2x1xf32> to vector<2x128xf32>
    %35 = arith.subf %31, %34 : vector<2x128xf32>
    %36 = math.exp %35 : vector<2x128xf32>
    %cst_22 = arith.constant dense<0.000000e+00> : vector<2xf32>
    %37 = vector.multi_reduction <add>, %36, %cst_22 [1] : vector<2x128xf32> to vector<2xf32>
    %38 = vector.shape_cast %37 : vector<2xf32> to vector<2x1xf32>
    %39 = math.log %38 : vector<2x1xf32>
    %40 = vector.broadcast %39 : vector<2x1xf32> to vector<2x128xf32>
    %41 = arith.subf %35, %40 : vector<2x128xf32>
    %c0_23 = arith.constant 0 : index
    %c0_24 = arith.constant 0 : index
    %42 = vector.load %arg8[%c0_23, %c0_24] : memref<2x128xf32, #tpu.memory_space<vmem>>, vector<2x128xf32>
    tpu.vector_store %arg8[%c0_23, %c0_24], %41 {strides = array<i32>} : memref<2x128xf32, #tpu.memory_space<vmem>>, vector<2x128xf32>,
    return
  }
}

</mosaic_0001>

<llo_original>
// kernel: net_forward.8
$region0: #{net_forward.8}
  #allocation0 [shape = 'u32[]', space=smem, size = 0x4, offset = 0x4, fixed_abs, tag = 'smem constant byte address 0x4 - core index']
  #allocation1 [shape = 'u32[144,128]{1,0:T(1,128)}', space=vmem, size = 0x12000, scoped, tag = 'internal scratch']
  %s0 = inlined_call_operand.vmem [shape: bf16[16,16], index: 0, kind: input, shape index: {}]
  %s1 = inlined_call_operand.vmem [shape: bf16[16,128], index: 1, kind: input, shape index: {}]
  %s2 = inlined_call_operand.vmem [shape: f32[1,128], index: 2, kind: input, shape index: {}]
  %s3 = inlined_call_operand.vmem [shape: f32[16,128], index: 3, kind: output, shape index: {}]
  %s4 = sld [smem:[#allocation0]]
  $region22: #{net_forward.8} parent=0
    _
  %s6 = ssub.s32 1, %s4
  %s7 = scalar_select 0, %s6, %s4
  // Predicated region
  $region2: #{net_forward.8} parent=0 // pred_check
    _
  $region3: #{net_forward.8} parent=0 // pred_check_branch
    %9 = sbr.rel (0) target = $region5
  $region4: #{net_forward.8} parent=0 // pred_region
    _
  $region5: #{net_forward.8} parent=0 // pred_fallthru
    _
  // Predicated region
  $region6: #{net_forward.8} parent=0 // pred_check
    _
  $region7: #{net_forward.8} parent=0 // pred_check_branch
    %11 = sbr.rel (0) target = $region9
  $region8: #{net_forward.8} parent=0 // pred_region
    _
  $region9: #{net_forward.8} parent=0 // pred_fallthru
    _
  // Predicated region
  $region10: #{net_forward.8} parent=0 // pred_check
    _
  $region11: #{net_forward.8} parent=0 // pred_check_branch
    %13 = sbr.rel (0) target = $region13
  $region12: #{net_forward.8} parent=0 // pred_region
    _
  $region13: #{net_forward.8} parent=0 // pred_fallthru
    _
  %v15 = vld [vmem:[%s0] sm:$0xf]
  %v16 = vld [vmem:[%s0 + $0x4] sm:$0xf]
  %v17 = vld [vmem:[%s1] sm:$0xf]
  %v18 = vld [vmem:[%s1 + $0x4] sm:$0xf]
  %v19 = vld [vmem:[%s2] sm:$0x1]
  %v21 = vlaneseq
  %v22 = vshrl.u32 %v21, 7
  %v23 = vsub.s32 0, %v22
  %v24 = vrot.slane %v19, %v23
  %v28 = vunpack.c.l.b16 %v15
  %v29 = vunpack.c.l.b16 %v16
  %v30 = vpack.c.b16 %v29, %v28
  %v33 = vunpack.c.l.b16 %v17
  %v34 = vunpack.c.l.b16 %v18
  %v35 = vpack.c.b16 %v34, %v33
  %vm37 = vcmask 130048
  %v39 = vsel %vm37, %v30, 0
  %41 = vmatprep.subr.bf16.mxu0 0
  %42 = vmatpush1.bf16.msra.mxu0 0
  %43 = vmatprep.subr.bf16.mxu0 0
  %44 = vmatpush1.bf16.msra.mxu0 0
  %45 = vmatprep.subr.bf16.mxu0 0
  %46 = vmatpush1.bf16.msra.mxu0 0
  %47 = vmatprep.subr.bf16.mxu0 0
  %48 = vmatpush1.bf16.msra.mxu0 0
  %49 = vmatprep.subr.bf16.mxu0 0
  %50 = vmatpush1.bf16.msra.mxu0 0
  %51 = vmatprep.subr.bf16.mxu0 0
  %52 = vmatpush1.bf16.msra.mxu0 0
  %53 = vmatprep.subr.bf16.mxu0 0
  %54 = vmatpush1.bf16.msra.mxu0 0
  %55 = vmatprep.subr.bf16.mxu0 0
  %56 = vmatpush1.bf16.msra.mxu0 %v35
  %57 = vmatprep.subr.bf16.mxu0 0
  %58 = vmatpush2.bf16.msra.mxu0 0
  %59 = vmatprep.subr.bf16.mxu0 0
  %60 = vmatpush2.bf16.msra.mxu0 0
  %61 = vmatprep.subr.bf16.mxu0 0
  %62 = vmatpush2.bf16.msra.mxu0 0
  %63 = vmatprep.subr.bf16.mxu0 0
  %64 = vmatpush2.bf16.msra.mxu0 0
  %65 = vmatprep.subr.bf16.mxu0 0
  %66 = vmatpush2.bf16.msra.mxu0 0
  %67 = vmatprep.subr.bf16.mxu0 0
  %68 = vmatpush2.bf16.msra.mxu0 0
  %69 = vmatprep.subr.bf16.mxu0 0
  %70 = vmatpush2.bf16.msra.mxu0 0
  %71 = vmatprep.subr.bf16.mxu0 0
  %72 = vmatpush2.bf16.msra.mxu0 0
  %73 = vmatprep.mubr.bf16.mxu0 0
  %74 = vmatmul.mubr.bf16.gmra.mxu0 %v39
  %v75 = vpop.f32.mrf.mxu0
  %v76 = vadd.f32 %v24, %v75
  %v77 = vpop.f32.mrf.mxu0
  %v78 = vpop.f32.mrf.mxu0
  %v79 = vadd.f32 %v24, %v78
  %v80 = vpop.f32.mrf.mxu0
  %81 = vdwg.mxu0
  %v82 = vmax.f32 %v76, 0.0
  %v83 = vmax.f32 %v79, 0.0
  %84 = vst [vmem:[%s3] sm:$0xff] %v82
  %85 = vst [vmem:[%s3 + $0x8] sm:$0xff] %v83
  // Predicated region
  $region14: #{net_forward.8} parent=0 // pred_check
    _
  $region15: #{net_forward.8} parent=0 // pred_check_branch
    %87 = sbr.rel (0) target = $region17
  $region16: #{net_forward.8} parent=0 // pred_region
    _
  $region17: #{net_forward.8} parent=0 // pred_fallthru
    _
  // Predicated region
  $region18: #{net_forward.8} parent=0 // pred_check
    _
  $region19: #{net_forward.8} parent=0 // pred_check_branch
    %89 = sbr.rel (0) target = $region21
  $region20: #{net_forward.8} parent=0 // pred_region
    _
  $region21: #{net_forward.8} parent=0 // pred_fallthru
    _

// kernel: net_forward.7
$region0: #{net_forward.7}
  #allocation0 [shape = 'u32[]', space=smem, size = 0x4, offset = 0x4, fixed_abs, tag = 'smem constant byte address 0x4 - core index']
  #allocation1 [shape = 'u32[144,128]{1,0:T(1,128)}', space=vmem, size = 0x12000, scoped, tag = 'internal scratch']
  %s0 = inlined_call_operand.vmem [shape: f32[16,128], index: 0, kind: input, shape index: {}]
  %s1 = inlined_call_operand.hbm [shape: f32[128,128], index: 1, kind: input, shape index: {}]
  %s2 = inlined_call_operand.vmem [shape: bf16[16,128], index: 2, kind: output, shape index: {}]
  %s3 = sld [smem:[#allocation0]]
  $region22: #{net_forward.7} parent=0
    _
  %s5 = ssub.s32 1, %s3
  %s6 = scalar_select 0, %s5, %s3
  $region1: #{net_forward.7} parent=0
    #allocation2 [shape = 'u8[65536]{0}', space=vmem, size = 0x10000, scoped, tag = 'input window, operand 1, single buffered']
    #allocation3 [shape = 's32[1]{0}', space=sflag, size = 0x4, scoped, tag = 'scoped memory for net_forward.7']
    %7 = vsyncpa [#allocation3], 0
    // Predicated region
    $region2: #{net_forward.7} parent=1 // pred_check
      _
    $region3: #{net_forward.7} parent=1 // pred_check_branch
      %9 = sbr.rel (0) target = $region5
    $region4: #{net_forward.7} parent=1 // pred_region
      _
    $region5: #{net_forward.7} parent=1 // pred_fallthru
      _
    // Predicated region
    $region6: #{net_forward.7} parent=1 // pred_check
      _
    $region7: #{net_forward.7} parent=1 // pred_check_branch
      %11 = sbr.rel (0) target = $region9
    $region8: #{net_forward.7} parent=1 // pred_region
      %s13 = ssub.s32 2048, 2048
      %14 = vsyncadd [#allocation3], %s13
      %s15 = sshll.u32 [#allocation2], 4
      %s16 = int_to_ptr.vmem [resolvable:$true] %s15
      %21 = dma.hbm_to_vmem [thread:$0]  %s1, 2048, %s16, [#allocation3], 128, 128, 8
    $region9: #{net_forward.7} parent=1 // pred_fallthru
      _
    // Predicated region
    $region10: #{net_forward.7} parent=1 // pred_check
      _
    $region11: #{net_forward.7} parent=1 // pred_check_branch
      %23 = sbr.rel (0) target = $region13
    $region12: #{net_forward.7} parent=1 // pred_region
      %24 = dma.done [#allocation3], 2048
    $region13: #{net_forward.7} parent=1 // pred_fallthru
      _
    %v25 = vld [vmem:[%s0] sm:$0xff]
    %v26 = vld [vmem:[%s0 + $0x8] sm:$0xff]
    %v27 = vld [vmem:[#allocation2] sm:$0xff]
    %v28 = vld [vmem:[#allocation2 + $0x8] sm:$0xff]
    %v29 = vld [vmem:[#allocation2 + $0x10] sm:$0xff]
    %v30 = vld [vmem:[#allocation2 + $0x18] sm:$0xff]
    %v31 = vld [vmem:[#allocation2 + $0x20] sm:$0xff]
    %v32 = vld [vmem:[#allocation2 + $0x28] sm:$0xff]
    %v33 = vld [vmem:[#allocation2 + $0x30] sm:$0xff]
    %v34 = vld [vmem:[#allocation2 + $0x38] sm:$0xff]
    %v35 = vld [vmem:[#allocation2 + $0x40] sm:$0xff]
    %v36 = vld [vmem:[#allocation2 + $0x48] sm:$0xff]
    %v37 = vld [vmem:[#allocation2 + $0x50] sm:$0xff]
    %v38 = vld [vmem:[#allocation2 + $0x58] sm:$0xff]
    %v39 = vld [vmem:[#allocation2 + $0x60] sm:$0xff]
    %v40 = vld [vmem:[#allocation2 + $0x68] sm:$0xff]
    %v41 = vld [vmem:[#allocation2 + $0x70] sm:$0xff]
    %v42 = vld [vmem:[#allocation2 + $0x78] sm:$0xff]
    %43 = vmatprep.subr.mxu0 0.0
    %44 = vmatpush1.msra.mxu0 %v42
    %45 = vmatprep.subr.mxu0 0.0
    %46 = vmatpush1.msra.mxu0 %v41
    %47 = vmatprep.subr.mxu0 0.0
    %48 = vmatpush1.msra.mxu0 %v40
    %49 = vmatprep.subr.mxu0 0.0
    %50 = vmatpush1.msra.mxu0 %v39
    %51 = vmatprep.subr.mxu0 0.0
    %52 = vmatpush1.msra.mxu0 %v38
    %53 = vmatprep.subr.mxu0 0.0
    %54 = vmatpush1.msra.mxu0 %v37
    %55 = vmatprep.subr.mxu0 0.0
    %56 = vmatpush1.msra.mxu0 %v36
    %57 = vmatprep.subr.mxu0 0.0
    %58 = vmatpush1.msra.mxu0 %v35
    %59 = vmatprep.subr.mxu0 0.0
    %60 = vmatpush1.msra.mxu0 %v34
    %61 = vmatprep.subr.mxu0 0.0
    %62 = vmatpush1.msra.mxu0 %v33
    %63 = vmatprep.subr.mxu0 0.0
    %64 = vmatpush1.msra.mxu0 %v32
    %65 = vmatprep.subr.mxu0 0.0
    %66 = vmatpush1.msra.mxu0 %v31
    %67 = vmatprep.subr.mxu0 0.0
    %68 = vmatpush1.msra.mxu0 %v30
    %69 = vmatprep.subr.mxu0 0.0
    %70 = vmatpush1.msra.mxu0 %v29
    %71 = vmatprep.subr.mxu0 0.0
    %72 = vmatpush1.msra.mxu0 %v28
    %73 = vmatprep.subr.mxu0 0.0
    %74 = vmatpush1.msra.mxu0 %v27
    %75 = vmatprep.subr.mxu0 0.0
    %76 = vmatpush2.msra.mxu0 0.0
    %77 = vmatprep.subr.mxu0 0.0
    %78 = vmatpush2.msra.mxu0 0.0
    %79 = vmatprep.subr.mxu0 0.0
    %80 = vmatpush2.msra.mxu0 0.0
    %81 = vmatprep.subr.mxu0 0.0
    %82 = vmatpush2.msra.mxu0 0.0
    %83 = vmatprep.subr.mxu0 0.0
    %84 = vmatpush2.msra.mxu0 0.0
    %85 = vmatprep.subr.mxu0 0.0
    %86 = vmatpush2.msra.mxu0 0.0
    %87 = vmatprep.subr.mxu0 0.0
    %88 = vmatpush2.msra.mxu0 0.0
    %89 = vmatprep.subr.mxu0 0.0
    %90 = vmatpush2.msra.mxu0 0.0
    %91 = vmatprep.subr.mxu0 0.0
    %92 = vmatpush2.msra.mxu0 0.0
    %93 = vmatprep.subr.mxu0 0.0
    %94 = vmatpush2.msra.mxu0 0.0
    %95 = vmatprep.subr.mxu0 0.0
    %96 = vmatpush2.msra.mxu0 0.0
    %97 = vmatprep.subr.mxu0 0.0
    %98 = vmatpush2.msra.mxu0 0.0
    %99 = vmatprep.subr.mxu0 0.0
    %100 = vmatpush2.msra.mxu0 0.0
    %101 = vmatprep.subr.mxu0 0.0
    %102 = vmatpush2.msra.mxu0 0.0
    %103 = vmatprep.subr.mxu0 0.0
    %104 = vmatpush2.msra.mxu0 0.0
    %105 = vmatprep.subr.mxu0 0.0
    %106 = vmatpush2.msra.mxu0 0.0
    %107 = vmatprep.mubr.f32.mxu0 0.0
    %108 = vmatmul.mubr.f32.gmra.mxu0 %v25
    %v109 = vpop.f32.mrf.mxu0
    %v110 = vadd.f32 0.0, %v109
    %v111 = vpop.f32.mrf.mxu0
    %112 = vmatprep.mubr.f32.mxu0 0.0
    %113 = vmatmul.mubr.f32.gmra.mxu0 %v26
    %v114 = vpop.f32.mrf.mxu0
    %v115 = vadd.f32 0.0, %v114
    %v116 = vpop.f32.mrf.mxu0
    %117 = vdwg.mxu0
    %v118 = vpack.c.bf16 %v115, %v110
    %v120 = vunpack.c.l.b16 %v118
    %v121 = vunpack.c.h.b16 %v118
    %v122 = vpack.c.b16 %v120, %v120
    %v123 = vpack.c.b16 %v121, %v121
    %126 = vst [vmem:[%s2] sm:$0xf] %v122
    %127 = vst [vmem:[%s2 + $0x4] sm:$0xf] %v123
    // Predicated region
    $region14: #{net_forward.7} parent=1 // pred_check
      _
    $region15: #{net_forward.7} parent=1 // pred_check_branch
      %129 = sbr.rel (0) target = $region17
    $region16: #{net_forward.7} parent=1 // pred_region
      _
    $region17: #{net_forward.7} parent=1 // pred_fallthru
      _
    // Predicated region
    $region18: #{net_forward.7} parent=1 // pred_check
      _
    $region19: #{net_forward.7} parent=1 // pred_check_branch
      %131 = sbr.rel (0) target = $region21
    $region20: #{net_forward.7} parent=1 // pred_region
      _
    $region21: #{net_forward.7} parent=1 // pred_fallthru
      _
    %132 = vsyncpa [#allocation3], 1

// kernel: net_forward.9
$region0: #{net_forward.9}
  #allocation0 [shape = 'u32[]', space=smem, size = 0x4, offset = 0x4, fixed_abs, tag = 'smem constant byte address 0x4 - core index']
  #allocation1 [shape = 'u32[144,128]{1,0:T(1,128)}', space=vmem, size = 0x12000, scoped, tag = 'internal scratch']
  %s0 = inlined_call_operand.vmem [shape: f32[16,128], index: 0, kind: input, shape index: {}]
  %s1 = inlined_call_operand.vmem [shape: f32[128,128], index: 1, kind: input, shape index: {}]
  %s2 = inlined_call_operand.vmem [shape: bf16[16,128], index: 2, kind: output, shape index: {}]
  %s3 = sld [smem:[#allocation0]]
  $region18: #{net_forward.9} parent=0
    _
  %s5 = ssub.s32 1, %s3
  %s6 = scalar_select 0, %s5, %s3
  // Predicated region
  $region2: #{net_forward.9} parent=0 // pred_check
    _
  $region3: #{net_forward.9} parent=0 // pred_check_branch
    %8 = sbr.rel (0) target = $region5
  $region4: #{net_forward.9} parent=0 // pred_region
    _
  $region5: #{net_forward.9} parent=0 // pred_fallthru
    _
  // Predicated region
  $region6: #{net_forward.9} parent=0 // pred_check
    _
  $region7: #{net_forward.9} parent=0 // pred_check_branch
    %10 = sbr.rel (0) target = $region9
  $region8: #{net_forward.9} parent=0 // pred_region
    _
  $region9: #{net_forward.9} parent=0 // pred_fallthru
    _
  %v11 = vld [vmem:[%s0] sm:$0xff]
  %v12 = vld [vmem:[%s0 + $0x8] sm:$0xff]
  %v13 = vld [vmem:[%s1] sm:$0xff]
  %v14 = vld [vmem:[%s1 + $0x8] sm:$0xff]
  %v15 = vld [vmem:[%s1 + $0x10] sm:$0xff]
  %v16 = vld [vmem:[%s1 + $0x18] sm:$0xff]
  %v17 = vld [vmem:[%s1 + $0x20] sm:$0xff]
  %v18 = vld [vmem:[%s1 + $0x28] sm:$0xff]
  %v19 = vld [vmem:[%s1 + $0x30] sm:$0xff]
  %v20 = vld [vmem:[%s1 + $0x38] sm:$0xff]
  %v21 = vld [vmem:[%s1 + $0x40] sm:$0xff]
  %v22 = vld [vmem:[%s1 + $0x48] sm:$0xff]
  %v23 = vld [vmem:[%s1 + $0x50] sm:$0xff]
  %v24 = vld [vmem:[%s1 + $0x58] sm:$0xff]
  %v25 = vld [vmem:[%s1 + $0x60] sm:$0xff]
  %v26 = vld [vmem:[%s1 + $0x68] sm:$0xff]
  %v27 = vld [vmem:[%s1 + $0x70] sm:$0xff]
  %v28 = vld [vmem:[%s1 + $0x78] sm:$0xff]
  %29 = vmatprep.subr.mxu0 0.0
  %30 = vmatpush1.msra.mxu0 %v28
  %31 = vmatprep.subr.mxu0 0.0
  %32 = vmatpush1.msra.mxu0 %v27
  %33 = vmatprep.subr.mxu0 0.0
  %34 = vmatpush1.msra.mxu0 %v26
  %35 = vmatprep.subr.mxu0 0.0
  %36 = vmatpush1.msra.mxu0 %v25
  %37 = vmatprep.subr.mxu0 0.0
  %38 = vmatpush1.msra.mxu0 %v24
  %39 = vmatprep.subr.mxu0 0.0
  %40 = vmatpush1.msra.mxu0 %v23
  %41 = vmatprep.subr.mxu0 0.0
  %42 = vmatpush1.msra.mxu0 %v22
  %43 = vmatprep.subr.mxu0 0.0
  %44 = vmatpush1.msra.mxu0 %v21
  %45 = vmatprep.subr.mxu0 0.0
  %46 = vmatpush1.msra.mxu0 %v20
  %47 = vmatprep.subr.mxu0 0.0
  %48 = vmatpush1.msra.mxu0 %v19
  %49 = vmatprep.subr.mxu0 0.0
  %50 = vmatpush1.msra.mxu0 %v18
  %51 = vmatprep.subr.mxu0 0.0
  %52 = vmatpush1.msra.mxu0 %v17
  %53 = vmatprep.subr.mxu0 0.0
  %54 = vmatpush1.msra.mxu0 %v16
  %55 = vmatprep.subr.mxu0 0.0
  %56 = vmatpush1.msra.mxu0 %v15
  %57 = vmatprep.subr.mxu0 0.0
  %58 = vmatpush1.msra.mxu0 %v14
  %59 = vmatprep.subr.mxu0 0.0
  %60 = vmatpush1.msra.mxu0 %v13
  %61 = vmatprep.subr.mxu0 0.0
  %62 = vmatpush2.msra.mxu0 0.0
  %63 = vmatprep.subr.mxu0 0.0
  %64 = vmatpush2.msra.mxu0 0.0
  %65 = vmatprep.subr.mxu0 0.0
  %66 = vmatpush2.msra.mxu0 0.0
  %67 = vmatprep.subr.mxu0 0.0
  %68 = vmatpush2.msra.mxu0 0.0
  %69 = vmatprep.subr.mxu0 0.0
  %70 = vmatpush2.msra.mxu0 0.0
  %71 = vmatprep.subr.mxu0 0.0
  %72 = vmatpush2.msra.mxu0 0.0
  %73 = vmatprep.subr.mxu0 0.0
  %74 = vmatpush2.msra.mxu0 0.0
  %75 = vmatprep.subr.mxu0 0.0
  %76 = vmatpush2.msra.mxu0 0.0
  %77 = vmatprep.subr.mxu0 0.0
  %78 = vmatpush2.msra.mxu0 0.0
  %79 = vmatprep.subr.mxu0 0.0
  %80 = vmatpush2.msra.mxu0 0.0
  %81 = vmatprep.subr.mxu0 0.0
  %82 = vmatpush2.msra.mxu0 0.0
  %83 = vmatprep.subr.mxu0 0.0
  %84 = vmatpush2.msra.mxu0 0.0
  %85 = vmatprep.subr.mxu0 0.0
  %86 = vmatpush2.msra.mxu0 0.0
  %87 = vmatprep.subr.mxu0 0.0
  %88 = vmatpush2.msra.mxu0 0.0
  %89 = vmatprep.subr.mxu0 0.0
  %90 = vmatpush2.msra.mxu0 0.0
  %91 = vmatprep.subr.mxu0 0.0
  %92 = vmatpush2.msra.mxu0 0.0
  %93 = vmatprep.mubr.f32.mxu0 0.0
  %94 = vmatmul.mubr.f32.gmra.mxu0 %v11
  %v95 = vpop.f32.mrf.mxu0
  %v96 = vadd.f32 0.0, %v95
  %v97 = vpop.f32.mrf.mxu0
  %98 = vmatprep.mubr.f32.mxu0 0.0
  %99 = vmatmul.mubr.f32.gmra.mxu0 %v12
  %v100 = vpop.f32.mrf.mxu0
  %v101 = vadd.f32 0.0, %v100
  %v102 = vpop.f32.mrf.mxu0
  %103 = vdwg.mxu0
  %v104 = vpack.c.bf16 %v101, %v96
  %v106 = vunpack.c.l.b16 %v104
  %v107 = vunpack.c.h.b16 %v104
  %v108 = vpack.c.b16 %v106, %v106
  %v109 = vpack.c.b16 %v107, %v107
  %112 = vst [vmem:[%s2] sm:$0xf] %v108
  %113 = vst [vmem:[%s2 + $0x4] sm:$0xf] %v109
  // Predicated region
  $region10: #{net_forward.9} parent=0 // pred_check
    _
  $region11: #{net_forward.9} parent=0 // pred_check_branch
    %115 = sbr.rel (0) target = $region13
  $region12: #{net_forward.9} parent=0 // pred_region
    _
  $region13: #{net_forward.9} parent=0 // pred_fallthru
    _
  // Predicated region
  $region14: #{net_forward.9} parent=0 // pred_check
    _
  $region15: #{net_forward.9} parent=0 // pred_check_branch
    %117 = sbr.rel (0) target = $region17
  $region16: #{net_forward.9} parent=0 // pred_region
    _
  $region17: #{net_forward.9} parent=0 // pred_fallthru
    _

// kernel: net_forward.13
$region0: #{net_forward.13}
  #allocation0 [shape = 'u32[]', space=smem, size = 0x4, offset = 0x4, fixed_abs, tag = 'smem constant byte address 0x4 - core index']
  #allocation1 [shape = 'u32[144,128]{1,0:T(1,128)}', space=vmem, size = 0x12000, scoped, tag = 'internal scratch']
  %s0 = inlined_call_operand.vmem [shape: f32[4,128], index: 0, kind: input, shape index: {}]
  %s1 = inlined_call_operand.vmem [shape: f32[2,4], index: 1, kind: input, shape index: {}]
  %s2 = inlined_call_operand.vmem [shape: f32[2,1], index: 2, kind: input, shape index: {}]
  %s3 = inlined_call_operand.vmem [shape: f32[128,128], index: 3, kind: input, shape index: {}]
  %s4 = inlined_call_operand.vmem [shape: f32[128,128], index: 4, kind: input, shape index: {}]
  %s5 = inlined_call_operand.vmem [shape: f32[1,128], index: 5, kind: input, shape index: {}]
  %s6 = inlined_call_operand.vmem [shape: f32[128,128], index: 6, kind: input, shape index: {}]
  %s7 = inlined_call_operand.vmem [shape: f32[1,128], index: 7, kind: input, shape index: {}]
  %s8 = inlined_call_operand.hbm [shape: f32[2,128], index: 8, kind: output, shape index: {}]
  %s9 = sld [smem:[#allocation0]]
  $region42: #{net_forward.13} parent=0
    _
  %s11 = ssub.s32 1, %s9
  %s12 = scalar_select 0, %s11, %s9
  $region1: #{net_forward.13} parent=0
    #allocation2 [shape = 'u8[1024]{0}', space=vmem, size = 0x400, scoped, tag = 'output window, operand 0, single buffered']
    #allocation3 [shape = 's32[1]{0}', space=sflag, size = 0x4, scoped, tag = 'scoped memory for net_forward.13']
    %13 = vsyncpa [#allocation3], 0
    // Predicated region
    $region2: #{net_forward.13} parent=1 // pred_check
      _
    $region3: #{net_forward.13} parent=1 // pred_check_branch
      %15 = sbr.rel (0) target = $region5
    $region4: #{net_forward.13} parent=1 // pred_region
      _
    $region5: #{net_forward.13} parent=1 // pred_fallthru
      _
    // Predicated region
    $region6: #{net_forward.13} parent=1 // pred_check
      _
    $region7: #{net_forward.13} parent=1 // pred_check_branch
      %17 = sbr.rel (0) target = $region9
    $region8: #{net_forward.13} parent=1 // pred_region
      _
    $region9: #{net_forward.13} parent=1 // pred_fallthru
      _
    // Predicated region
    $region10: #{net_forward.13} parent=1 // pred_check
      _
    $region11: #{net_forward.13} parent=1 // pred_check_branch
      %19 = sbr.rel (0) target = $region13
    $region12: #{net_forward.13} parent=1 // pred_region
      _
    $region13: #{net_forward.13} parent=1 // pred_fallthru
      _
    // Predicated region
    $region14: #{net_forward.13} parent=1 // pred_check
      _
    $region15: #{net_forward.13} parent=1 // pred_check_branch
      %21 = sbr.rel (0) target = $region17
    $region16: #{net_forward.13} parent=1 // pred_region
      _
    $region17: #{net_forward.13} parent=1 // pred_fallthru
      _
    // Predicated region
    $region18: #{net_forward.13} parent=1 // pred_check
      _
    $region19: #{net_forward.13} parent=1 // pred_check_branch
      %23 = sbr.rel (0) target = $region21
    $region20: #{net_forward.13} parent=1 // pred_region
      _
    $region21: #{net_forward.13} parent=1 // pred_fallthru
      _
    // Predicated region
    $region22: #{net_forward.13} parent=1 // pred_check
      _
    $region23: #{net_forward.13} parent=1 // pred_check_branch
      %25 = sbr.rel (0) target = $region25
    $region24: #{net_forward.13} parent=1 // pred_region
      _
    $region25: #{net_forward.13} parent=1 // pred_fallthru
      _
    // Predicated region
    $region26: #{net_forward.13} parent=1 // pred_check
      _
    $region27: #{net_forward.13} parent=1 // pred_check_branch
      %27 = sbr.rel (0) target = $region29
    $region28: #{net_forward.13} parent=1 // pred_region
      _
    $region29: #{net_forward.13} parent=1 // pred_fallthru
      _
    // Predicated region
    $region30: #{net_forward.13} parent=1 // pred_check
      _
    $region31: #{net_forward.13} parent=1 // pred_check_branch
      %29 = sbr.rel (0) target = $region33
    $region32: #{net_forward.13} parent=1 // pred_region
      _
    $region33: #{net_forward.13} parent=1 // pred_fallthru
      _
    %v30 = vld [vmem:[%s0] sm:$0xf]
    %v31 = vld [vmem:[%s1] sm:$0x3]
    %vm32 = vcmask 31744
    %v34 = vsel %vm32, %v31, 0
    %vm36 = vcmask 1043456
    %v38 = vsel %vm36, %v30, 0
    %40 = vmatprep.subr.mxu0 0.0
    %41 = vmatpush1.msra.mxu0 0.0
    %42 = vmatprep.subr.mxu0 0.0
    %43 = vmatpush1.msra.mxu0 0.0
    %44 = vmatprep.subr.mxu0 0.0
    %45 = vmatpush1.msra.mxu0 0.0
    %46 = vmatprep.subr.mxu0 0.0
    %47 = vmatpush1.msra.mxu0 0.0
    %48 = vmatprep.subr.mxu0 0.0
    %49 = vmatpush1.msra.mxu0 0.0
    %50 = vmatprep.subr.mxu0 0.0
    %51 = vmatpush1.msra.mxu0 0.0
    %52 = vmatprep.subr.mxu0 0.0
    %53 = vmatpush1.msra.mxu0 0.0
    %54 = vmatprep.subr.mxu0 0.0
    %55 = vmatpush1.msra.mxu0 0.0
    %56 = vmatprep.subr.mxu0 0.0
    %57 = vmatpush1.msra.mxu0 0.0
    %58 = vmatprep.subr.mxu0 0.0
    %59 = vmatpush1.msra.mxu0 0.0
    %60 = vmatprep.subr.mxu0 0.0
    %61 = vmatpush1.msra.mxu0 0.0
    %62 = vmatprep.subr.mxu0 0.0
    %63 = vmatpush1.msra.mxu0 0.0
    %64 = vmatprep.subr.mxu0 0.0
    %65 = vmatpush1.msra.mxu0 0.0
    %66 = vmatprep.subr.mxu0 0.0
    %67 = vmatpush1.msra.mxu0 0.0
    %68 = vmatprep.subr.mxu0 0.0
    %69 = vmatpush1.msra.mxu0 0.0
    %70 = vmatprep.subr.mxu0 0.0
    %71 = vmatpush1.msra.mxu0 %v38
    %72 = vmatprep.subr.mxu0 0.0
    %73 = vmatpush2.msra.mxu0 0.0
    %74 = vmatprep.subr.mxu0 0.0
    %75 = vmatpush2.msra.mxu0 0.0
    %76 = vmatprep.subr.mxu0 0.0
    %77 = vmatpush2.msra.mxu0 0.0
    %78 = vmatprep.subr.mxu0 0.0
    %79 = vmatpush2.msra.mxu0 0.0
    %80 = vmatprep.subr.mxu0 0.0
    %81 = vmatpush2.msra.mxu0 0.0
    %82 = vmatprep.subr.mxu0 0.0
    %83 = vmatpush2.msra.mxu0 0.0
    %84 = vmatprep.subr.mxu0 0.0
    %85 = vmatpush2.msra.mxu0 0.0
    %86 = vmatprep.subr.mxu0 0.0
    %87 = vmatpush2.msra.mxu0 0.0
    %88 = vmatprep.subr.mxu0 0.0
    %89 = vmatpush2.msra.mxu0 0.0
    %90 = vmatprep.subr.mxu0 0.0
    %91 = vmatpush2.msra.mxu0 0.0
    %92 = vmatprep.subr.mxu0 0.0
    %93 = vmatpush2.msra.mxu0 0.0
    %94 = vmatprep.subr.mxu0 0.0
    %95 = vmatpush2.msra.mxu0 0.0
    %96 = vmatprep.subr.mxu0 0.0
    %97 = vmatpush2.msra.mxu0 0.0
    %98 = vmatprep.subr.mxu0 0.0
    %99 = vmatpush2.msra.mxu0 0.0
    %100 = vmatprep.subr.mxu0 0.0
    %101 = vmatpush2.msra.mxu0 0.0
    %102 = vmatprep.subr.mxu0 0.0
    %103 = vmatpush2.msra.mxu0 0.0
    %104 = vmatprep.mubr.f32.mxu0 0.0
    %105 = vmatmul.mubr.f32.gmra.mxu0 %v34
    %v106 = vpop.f32.mrf.mxu0
    %v107 = vadd.f32 0.0, %v106
    %v108 = vpop.f32.mrf.mxu0
    %109 = vdwg.mxu0
    %v110 = vld [vmem:[%s2] sm:$0x3]
    %112 = vset.pattern.permute.xlu0 0
    %113 = vperm.xlu0 %112, %v110
    %v114 = vpop.permute.xlu0 %113
    %v116 = vmul.f32 %v107, %v114
    %v117 = vlaneseq
    %v118 = vshrl.u32 %v117, 7
    %v119 = vsub.s32 0, %v118
    %v120 = vrot.slane %v31, %v119
    %122 = vbcast.lane.b32.xlu0 %v120, 256
    %v123 = vpop.permute.xlu0 %122
    %v124 = vlaneseq
    %v125 = vshrl.u32 %v124, 7
    %v126 = vsub.s32 1, %v125
    %v127 = vrot.slane %v31, %v126
    %129 = vbcast.lane.b32.xlu0 %v127, 256
    %v130 = vpop.permute.xlu0 %129
    %v131 = vmul.f32 %v123, %v30
    %v132 = vmul.f32 %v130, %v30
    %v133 = vsel %vm36, %v131, -inf
    %v134 = vrot.slane %v133, 4
    %v135 = vmax.f32 %v133, %v134
    %v136 = vrot.slane %v135, 2
    %v137 = vmax.f32 %v135, %v136
    %v138 = vrot.slane %v137, 1
    %v139 = vmax.f32 %v137, %v138
    %v140 = vsel %vm36, %v132, -inf
    %v141 = vrot.slane %v140, 4
    %v142 = vmax.f32 %v140, %v141
    %v143 = vrot.slane %v142, 2
    %v144 = vmax.f32 %v142, %v143
    %v145 = vrot.slane %v144, 1
    %v146 = vmax.f32 %v144, %v145
    %v147 = vld [vmem:[%s3] sm:$0xff]
    %v148 = vld [vmem:[%s3 + $0x8] sm:$0xff]
    %v149 = vld [vmem:[%s3 + $0x10] sm:$0xff]
    %v150 = vld [vmem:[%s3 + $0x18] sm:$0xff]
    %v151 = vld [vmem:[%s3 + $0x20] sm:$0xff]
    %v152 = vld [vmem:[%s3 + $0x28] sm:$0xff]
    %v153 = vld [vmem:[%s3 + $0x30] sm:$0xff]
    %v154 = vld [vmem:[%s3 + $0x38] sm:$0xff]
    %v155 = vld [vmem:[%s3 + $0x40] sm:$0xff]
    %v156 = vld [vmem:[%s3 + $0x48] sm:$0xff]
    %v157 = vld [vmem:[%s3 + $0x50] sm:$0xff]
    %v158 = vld [vmem:[%s3 + $0x58] sm:$0xff]
    %v159 = vld [vmem:[%s3 + $0x60] sm:$0xff]
    %v160 = vld [vmem:[%s3 + $0x68] sm:$0xff]
    %v161 = vld [vmem:[%s3 + $0x70] sm:$0xff]
    %v162 = vld [vmem:[%s3 + $0x78] sm:$0xff]
    %v163 = vld [vmem:[%s4] sm:$0xff]
    %v164 = vld [vmem:[%s4 + $0x8] sm:$0xff]
    %v165 = vld [vmem:[%s4 + $0x10] sm:$0xff]
    %v166 = vld [vmem:[%s4 + $0x18] sm:$0xff]
    %v167 = vld [vmem:[%s4 + $0x20] sm:$0xff]
    %v168 = vld [vmem:[%s4 + $0x28] sm:$0xff]
    %v169 = vld [vmem:[%s4 + $0x30] sm:$0xff]
    %v170 = vld [vmem:[%s4 + $0x38] sm:$0xff]
    %v171 = vld [vmem:[%s4 + $0x40] sm:$0xff]
    %v172 = vld [vmem:[%s4 + $0x48] sm:$0xff]
    %v173 = vld [vmem:[%s4 + $0x50] sm:$0xff]
    %v174 = vld [vmem:[%s4 + $0x58] sm:$0xff]
    %v175 = vld [vmem:[%s4 + $0x60] sm:$0xff]
    %v176 = vld [vmem:[%s4 + $0x68] sm:$0xff]
    %v177 = vld [vmem:[%s4 + $0x70] sm:$0xff]
    %v178 = vld [vmem:[%s4 + $0x78] sm:$0xff]
    %179 = vmatprep.subr.mxu0 0.0
    %180 = vmatpush1.msra.mxu0 %v178
    %181 = vmatprep.subr.mxu0 0.0
    %182 = vmatpush1.msra.mxu0 %v177
    %183 = vmatprep.subr.mxu0 0.0
    %184 = vmatpush1.msra.mxu0 %v176
    %185 = vmatprep.subr.mxu0 0.0
    %186 = vmatpush1.msra.mxu0 %v175
    %187 = vmatprep.subr.mxu0 0.0
    %188 = vmatpush1.msra.mxu0 %v174
    %189 = vmatprep.subr.mxu0 0.0
    %190 = vmatpush1.msra.mxu0 %v173
    %191 = vmatprep.subr.mxu0 0.0
    %192 = vmatpush1.msra.mxu0 %v172
    %193 = vmatprep.subr.mxu0 0.0
    %194 = vmatpush1.msra.mxu0 %v171
    %195 = vmatprep.subr.mxu0 0.0
    %196 = vmatpush1.msra.mxu0 %v170
    %197 = vmatprep.subr.mxu0 0.0
    %198 = vmatpush1.msra.mxu0 %v169
    %199 = vmatprep.subr.mxu0 0.0
    %200 = vmatpush1.msra.mxu0 %v168
    %201 = vmatprep.subr.mxu0 0.0
    %202 = vmatpush1.msra.mxu0 %v167
    %203 = vmatprep.subr.mxu0 0.0
    %204 = vmatpush1.msra.mxu0 %v166
    %205 = vmatprep.subr.mxu0 0.0
    %206 = vmatpush1.msra.mxu0 %v165
    %207 = vmatprep.subr.mxu0 0.0
    %208 = vmatpush1.msra.mxu0 %v164
    %209 = vmatprep.subr.mxu0 0.0
    %210 = vmatpush1.msra.mxu0 %v163
    %211 = vmatprep.subr.mxu0 0.0
    %212 = vmatpush2.msra.mxu0 0.0
    %213 = vmatprep.subr.mxu0 0.0
    %214 = vmatpush2.msra.mxu0 0.0
    %215 = vmatprep.subr.mxu0 0.0
    %216 = vmatpush2.msra.mxu0 0.0
    %217 = vmatprep.subr.mxu0 0.0
    %218 = vmatpush2.msra.mxu0 0.0
    %219 = vmatprep.subr.mxu0 0.0
    %220 = vmatpush2.msra.mxu0 0.0
    %221 = vmatprep.subr.mxu0 0.0
    %222 = vmatpush2.msra.mxu0 0.0
    %223 = vmatprep.subr.mxu0 0.0
    %224 = vmatpush2.msra.mxu0 0.0
    %225 = vmatprep.subr.mxu0 0.0
    %226 = vmatpush2.msra.mxu0 0.0
    %227 = vmatprep.subr.mxu0 0.0
    %228 = vmatpush2.msra.mxu0 0.0
    %229 = vmatprep.subr.mxu0 0.0
    %230 = vmatpush2.msra.mxu0 0.0
    %231 = vmatprep.subr.mxu0 0.0
    %232 = vmatpush2.msra.mxu0 0.0
    %233 = vmatprep.subr.mxu0 0.0
    %234 = vmatpush2.msra.mxu0 0.0
    %235 = vmatprep.subr.mxu0 0.0
    %236 = vmatpush2.msra.mxu0 0.0
    %237 = vmatprep.subr.mxu0 0.0
    %238 = vmatpush2.msra.mxu0 0.0
    %239 = vmatprep.subr.mxu0 0.0
    %240 = vmatpush2.msra.mxu0 0.0
    %241 = vmatprep.subr.mxu0 0.0
    %242 = vmatpush2.msra.mxu0 0.0
    %243 = vmatprep.mubr.f32.mxu0 0.0
    %244 = vmatmul.mubr.f32.gmra.mxu0 %v116
    %v245 = vpop.f32.mrf.mxu0
    %v246 = vadd.f32 0.0, %v245
    %v247 = vpop.f32.mrf.mxu0
    %248 = vdwg.mxu0
    %vm251 = vcmask 1041409
    %v252 = vsel %vm251, %v146, %v139
    %254 = vmatprep.subr.mxu0 0.0
    %255 = vmatpush1.msra.mxu0 %v162
    %256 = vmatprep.subr.mxu0 0.0
    %257 = vmatpush1.msra.mxu0 %v161
    %258 = vmatprep.subr.mxu0 0.0
    %259 = vmatpush1.msra.mxu0 %v160
    %260 = vmatprep.subr.mxu0 0.0
    %261 = vmatpush1.msra.mxu0 %v159
    %262 = vmatprep.subr.mxu0 0.0
    %263 = vmatpush1.msra.mxu0 %v158
    %264 = vmatprep.subr.mxu0 0.0
    %265 = vmatpush1.msra.mxu0 %v157
    %266 = vmatprep.subr.mxu0 0.0
    %267 = vmatpush1.msra.mxu0 %v156
    %268 = vmatprep.subr.mxu0 0.0
    %269 = vmatpush1.msra.mxu0 %v155
    %270 = vmatprep.subr.mxu0 0.0
    %271 = vmatpush1.msra.mxu0 %v154
    %272 = vmatprep.subr.mxu0 0.0
    %273 = vmatpush1.msra.mxu0 %v153
    %274 = vmatprep.subr.mxu0 0.0
    %275 = vmatpush1.msra.mxu0 %v152
    %276 = vmatprep.subr.mxu0 0.0
    %277 = vmatpush1.msra.mxu0 %v151
    %278 = vmatprep.subr.mxu0 0.0
    %279 = vmatpush1.msra.mxu0 %v150
    %280 = vmatprep.subr.mxu0 0.0
    %281 = vmatpush1.msra.mxu0 %v149
    %282 = vmatprep.subr.mxu0 0.0
    %283 = vmatpush1.msra.mxu0 %v148
    %284 = vmatprep.subr.mxu0 0.0
    %285 = vmatpush1.msra.mxu0 %v147
    %286 = vmatprep.subr.mxu0 0.0
    %287 = vmatpush2.msra.mxu0 0.0
    %288 = vmatprep.subr.mxu0 0.0
    %289 = vmatpush2.msra.mxu0 0.0
    %290 = vmatprep.subr.mxu0 0.0
    %291 = vmatpush2.msra.mxu0 0.0
    %292 = vmatprep.subr.mxu0 0.0
    %293 = vmatpush2.msra.mxu0 0.0
    %294 = vmatprep.subr.mxu0 0.0
    %295 = vmatpush2.msra.mxu0 0.0
    %296 = vmatprep.subr.mxu0 0.0
    %297 = vmatpush2.msra.mxu0 0.0
    %298 = vmatprep.subr.mxu0 0.0
    %299 = vmatpush2.msra.mxu0 0.0
    %300 = vmatprep.subr.mxu0 0.0
    %301 = vmatpush2.msra.mxu0 0.0
    %302 = vmatprep.subr.mxu0 0.0
    %303 = vmatpush2.msra.mxu0 0.0
    %304 = vmatprep.subr.mxu0 0.0
    %305 = vmatpush2.msra.mxu0 0.0
    %306 = vmatprep.subr.mxu0 0.0
    %307 = vmatpush2.msra.mxu0 0.0
    %308 = vmatprep.subr.mxu0 0.0
    %309 = vmatpush2.msra.mxu0 0.0
    %310 = vmatprep.subr.mxu0 0.0
    %311 = vmatpush2.msra.mxu0 0.0
    %312 = vmatprep.subr.mxu0 0.0
    %313 = vmatpush2.msra.mxu0 0.0
    %314 = vmatprep.subr.mxu0 0.0
    %315 = vmatpush2.msra.mxu0 0.0
    %316 = vmatprep.subr.mxu0 0.0
    %317 = vmatpush2.msra.mxu0 0.0
    %318 = vmatprep.mubr.f32.mxu0 0.0
    %319 = vmatmul.mubr.f32.gmra.mxu0 %v252
    %v320 = vpop.f32.mrf.mxu0
    %v321 = vadd.f32 %v246, %v320
    %v322 = vpop.f32.mrf.mxu0
    %323 = vdwg.mxu0
    %v324 = vld [vmem:[%s5] sm:$0x1]
    %v326 = vlaneseq
    %v327 = vshrl.u32 %v326, 7
    %v328 = vsub.s32 0, %v327
    %v329 = vrot.slane %v324, %v328
    %v331 = vadd.f32 %v321, %v329
    %v332 = vmax.f32 %v331, 0.0
    %v333 = vld [vmem:[%s6] sm:$0xff]
    %v334 = vld [vmem:[%s6 + $0x8] sm:$0xff]
    %v335 = vld [vmem:[%s6 + $0x10] sm:$0xff]
    %v336 = vld [vmem:[%s6 + $0x18] sm:$0xff]
    %v337 = vld [vmem:[%s6 + $0x20] sm:$0xff]
    %v338 = vld [vmem:[%s6 + $0x28] sm:$0xff]
    %v339 = vld [vmem:[%s6 + $0x30] sm:$0xff]
    %v340 = vld [vmem:[%s6 + $0x38] sm:$0xff]
    %v341 = vld [vmem:[%s6 + $0x40] sm:$0xff]
    %v342 = vld [vmem:[%s6 + $0x48] sm:$0xff]
    %v343 = vld [vmem:[%s6 + $0x50] sm:$0xff]
    %v344 = vld [vmem:[%s6 + $0x58] sm:$0xff]
    %v345 = vld [vmem:[%s6 + $0x60] sm:$0xff]
    %v346 = vld [vmem:[%s6 + $0x68] sm:$0xff]
    %v347 = vld [vmem:[%s6 + $0x70] sm:$0xff]
    %v348 = vld [vmem:[%s6 + $0x78] sm:$0xff]
    %v349 = vld [vmem:[%s7] sm:$0x1]
    %v351 = vlaneseq
    %v352 = vshrl.u32 %v351, 7
    %v353 = vsub.s32 0, %v352
    %v354 = vrot.slane %v349, %v353
    %356 = vmatprep.subr.mxu0 0.0
    %357 = vmatpush1.msra.mxu0 %v348
    %358 = vmatprep.subr.mxu0 0.0
    %359 = vmatpush1.msra.mxu0 %v347
    %360 = vmatprep.subr.mxu0 0.0
    %361 = vmatpush1.msra.mxu0 %v346
    %362 = vmatprep.subr.mxu0 0.0
    %363 = vmatpush1.msra.mxu0 %v345
    %364 = vmatprep.subr.mxu0 0.0
    %365 = vmatpush1.msra.mxu0 %v344
    %366 = vmatprep.subr.mxu0 0.0
    %367 = vmatpush1.msra.mxu0 %v343
    %368 = vmatprep.subr.mxu0 0.0
    %369 = vmatpush1.msra.mxu0 %v342
    %370 = vmatprep.subr.mxu0 0.0
    %371 = vmatpush1.msra.mxu0 %v341
    %372 = vmatprep.subr.mxu0 0.0
    %373 = vmatpush1.msra.mxu0 %v340
    %374 = vmatprep.subr.mxu0 0.0
    %375 = vmatpush1.msra.mxu0 %v339
    %376 = vmatprep.subr.mxu0 0.0
    %377 = vmatpush1.msra.mxu0 %v338
    %378 = vmatprep.subr.mxu0 0.0
    %379 = vmatpush1.msra.mxu0 %v337
    %380 = vmatprep.subr.mxu0 0.0
    %381 = vmatpush1.msra.mxu0 %v336
    %382 = vmatprep.subr.mxu0 0.0
    %383 = vmatpush1.msra.mxu0 %v335
    %384 = vmatprep.subr.mxu0 0.0
    %385 = vmatpush1.msra.mxu0 %v334
    %386 = vmatprep.subr.mxu0 0.0
    %387 = vmatpush1.msra.mxu0 %v333
    %388 = vmatprep.subr.mxu0 0.0
    %389 = vmatpush2.msra.mxu0 0.0
    %390 = vmatprep.subr.mxu0 0.0
    %391 = vmatpush2.msra.mxu0 0.0
    %392 = vmatprep.subr.mxu0 0.0
    %393 = vmatpush2.msra.mxu0 0.0
    %394 = vmatprep.subr.mxu0 0.0
    %395 = vmatpush2.msra.mxu0 0.0
    %396 = vmatprep.subr.mxu0 0.0
    %397 = vmatpush2.msra.mxu0 0.0
    %398 = vmatprep.subr.mxu0 0.0
    %399 = vmatpush2.msra.mxu0 0.0
    %400 = vmatprep.subr.mxu0 0.0
    %401 = vmatpush2.msra.mxu0 0.0
    %402 = vmatprep.subr.mxu0 0.0
    %403 = vmatpush2.msra.mxu0 0.0
    %404 = vmatprep.subr.mxu0 0.0
    %405 = vmatpush2.msra.mxu0 0.0
    %406 = vmatprep.subr.mxu0 0.0
    %407 = vmatpush2.msra.mxu0 0.0
    %408 = vmatprep.subr.mxu0 0.0
    %409 = vmatpush2.msra.mxu0 0.0
    %410 = vmatprep.subr.mxu0 0.0
    %411 = vmatpush2.msra.mxu0 0.0
    %412 = vmatprep.subr.mxu0 0.0
    %413 = vmatpush2.msra.mxu0 0.0
    %414 = vmatprep.subr.mxu0 0.0
    %415 = vmatpush2.msra.mxu0 0.0
    %416 = vmatprep.subr.mxu0 0.0
    %417 = vmatpush2.msra.mxu0 0.0
    %418 = vmatprep.subr.mxu0 0.0
    %419 = vmatpush2.msra.mxu0 0.0
    %420 = vmatprep.mubr.f32.mxu0 0.0
    %421 = vmatmul.mubr.f32.gmra.mxu0 %v332
    %v422 = vpop.f32.mrf.mxu0
    %v423 = vadd.f32 %v354, %v422
    %v424 = vpop.f32.mrf.mxu0
    %425 = vdwg.mxu0
    %v426 = vlaneseq
    %v427 = vand.u32 %v426, 127
    %vm428 = vcmp.lt.s32.totalorder %v427, 3
    %v429 = vsel %vm428, %v423, -1e+30
    %vm430 = vcmask 1041408
    %v431 = vsel %vm430, %v429, -inf
    %432 = vmax.xlane.f32.xlu0 %v431
    %v433 = vpop.xlane.xlu0 %432
    %v434 = vsub.f32 %v429, %v433
    %v435 = vmul.f32 %v434, 1.442695
    %v436 = vpow.pop %v435
    %v437 = vsel %vm430, %v436, 0.0
    %438 = vadd.xlane.f32.xlu0 %v437
    %v439 = vpop.xlane.xlu0 %438
    %v440 = vlog2.pop %v439
    %v441 = vmul.f32 %v440, 0.6931472
    %v442 = vsub.f32 %v434, %v441
    %443 = vst [vmem:[#allocation2] sm:$0x3] %v442
    // Predicated region
    $region34: #{net_forward.13} parent=1 // pred_check
      _
    $region35: #{net_forward.13} parent=1 // pred_check_branch
      %445 = sbr.rel (0) target = $region37
    $region36: #{net_forward.13} parent=1 // pred_region
      %s447 = ssub.s32 32, 32
      %448 = vsyncadd [#allocation3], %s447
      %s450 = sshll.u32 [#allocation2], 4
      %s451 = int_to_ptr.vmem [resolvable:$true] %s450
      %453 = dma.vmem_to_hbm [thread:$0]  %s451, 32, %s8, [#allocation3]
    $region37: #{net_forward.13} parent=1 // pred_fallthru
      _
    // Predicated region
    $region38: #{net_forward.13} parent=1 // pred_check
      _
    $region39: #{net_forward.13} parent=1 // pred_check_branch
      %455 = sbr.rel (0) target = $region41
    $region40: #{net_forward.13} parent=1 // pred_region
      %456 = dma.done [#allocation3], 32
    $region41: #{net_forward.13} parent=1 // pred_fallthru
      _
    %457 = vsyncpa [#allocation3], 1

</llo_original>
